<compile_context>
chip_gen: v5e
topology: v5e:2x2
jax: 0.10.0
libtpu: 0.0.40
codegen_flags: <defaults>
</compile_context>

<pallas_src>
import math

import jax
import jax.numpy as jnp
from jax.experimental import pallas as pl
from jax.experimental.pallas import tpu as pltpu


def _make_sinusoidal_pos_embed(num_positions: int, embed_dim: int,
                               temperature: float = 10000.0) -> jnp.ndarray:
    """Init-time buffer creation (matches the PyTorch buffer exactly)."""
    position = jnp.arange(num_positions, dtype=jnp.float32)[:, None]          # (P, 1)
    div_term = jnp.exp(jnp.arange(0, embed_dim, 2, dtype=jnp.float32)
                       * -(math.log(temperature) / embed_dim))                 # (D/2,)
    pe = jnp.zeros((num_positions, embed_dim), dtype=jnp.float32)
    pe = pe.at[:, 0::2].set(jnp.sin(position * div_term))
    pe = pe.at[:, 1::2].set(jnp.cos(position * div_term))
    return pe[None]                                                            # (1, P, D)


def _pos_embed_kernel(cls0_ref, pos_ref, x_ref, o_ref):
    # cls0_ref: (1, 1, D)  = cls_token + pos_embed[:, :1]   (precomputed, resident)
    # pos_ref : (1, N, D)  = pos_embed[:, 1:]               (resident)
    # x_ref   : (Bb, N, D) batch block of patch embeddings
    # o_ref   : (Bb, N+1, D) output block
    bb, _, d = o_ref.shape
    # Row 0: precomputed cls+pos0 row, broadcast across the batch block.
    o_ref[:, 0:1, :] = jnp.broadcast_to(cls0_ref[...], (bb, 1, d)).astype(o_ref.dtype)
    # Rows 1..N: x + pos_rest, no in-kernel slicing of the pos buffer needed.
    o_ref[:, 1:, :] = (x_ref[...] + pos_ref[...]).astype(o_ref.dtype)


def _cores_per_chip() -> int:
    """Best-effort TensorCore-per-chip query; clamped to [1, 2]."""
    try:
        info = pltpu.get_tpu_info()
        for attr in ("num_cores", "core_count", "tensorcore_count", "num_tensorcores"):
            v = getattr(info, attr, None)
            if isinstance(v, int) and v > 0:
                return max(1, min(int(v), 2))
    except Exception:
        pass
    try:
        dev = jax.devices()[0]
        for attr in ("num_cores", "core_count"):
            v = getattr(dev, attr, None)
            if isinstance(v, int) and v > 0:
                return max(1, min(int(v), 2))
    except Exception:
        pass
    return 1  # conservative fallback (v5e/v6e behavior)


def _choose_batch_block(B: int, N: int, D: int, itemsize: int, cores: int,
                        target_bytes: int = 8 << 20) -> int:
    """Pick Bb so one (input + output) batch block is ~target_bytes."""
    per_batch_bytes = (N + (N + 1)) * D * itemsize
    bb = max(1, target_bytes // max(per_batch_bytes, 1))
    bb = int(min(bb, B))
    # Megacore (2 TC/chip): keep >= 2 grid steps per core so BlockSpec double
    # buffering has something to overlap.  Single-core parts take one big step.
    min_steps = 2 * cores if cores > 1 else 1
    if min_steps > 1 and B >= min_steps:
        bb = min(bb, -(-B // min_steps))
    return max(1, bb)


def sinusoidal_positional_embedding(x: jnp.ndarray,
                                    cls_token: jnp.ndarray,
                                    pos_embed: jnp.ndarray) -> jnp.ndarray:
    """x: (B, N, D); cls_token: (1, 1, D); pos_embed: (1, N+1, D) -> (B, N+1, D)."""
    B, N, D = x.shape
    P = N + 1
    assert pos_embed.shape == (1, P, D)
    assert cls_token.shape == (1, 1, D)

    # Pre-split the positional buffer (see header): cls row add hoisted to XLA,
    # remaining pos rows aligned with x so the kernel add is (8,128)-friendly.
    # Cast to x.dtype in the wrapper (note: for bf16 activations this rounds
    # pos_embed before the add, vs PyTorch's f32 add; exact for f32 inputs).
    cls_plus_pos0 = (cls_token + pos_embed[:, :1, :]).astype(x.dtype)   # (1, 1, D)
    pos_rest = pos_embed[:, 1:, :].astype(x.dtype)                      # (1, N, D)

    itemsize = jnp.dtype(x.dtype).itemsize
    cores = _cores_per_chip()
    Bb = _choose_batch_block(B, N, D, itemsize, cores)
    num_blocks = pl.cdiv(B, Bb)

    # VMEM budget: double-buffered x-block + out-block, plus resident pos/cls,
    # plus headroom; capped at 32 MiB (safe on v7x's 64 MiB and v5e/v6e's 128 MiB).
    block_bytes = (Bb * N * D + Bb * P * D) * itemsize
    resident_bytes = (N * D + D) * itemsize
    vmem_limit = int(min(max(2 * block_bytes + 2 * resident_bytes + (2 << 20), 4 << 20),
                         32 << 20))

    return pl.pallas_call(
        _pos_embed_kernel,
        out_shape=jax.ShapeDtypeStruct((B, P, D), x.dtype),
        grid_spec=pltpu.PrefetchScalarGridSpec(
            num_scalar_prefetch=0,
            grid=(num_blocks,),
            in_specs=[
                pl.BlockSpec((1, 1, D), lambda b: (0, 0, 0)),    # cls + pos[0] (resident)
                pl.BlockSpec((1, N, D), lambda b: (0, 0, 0)),    # pos[1:]      (resident)
                pl.BlockSpec((Bb, N, D), lambda b: (b, 0, 0)),   # x, batch-blocked
            ],
            out_specs=pl.BlockSpec((Bb, P, D), lambda b: (b, 0, 0)),
        ),
        compiler_params=pltpu.CompilerParams(
            dimension_semantics=("parallel",),
            vmem_limit_bytes=vmem_limit),
    )(cls_plus_pos0, pos_rest, x)


if __name__ == "__main__":
    # Module config (small): num_patches=8, embed_dim=32, class_token=True, dropout=0.0
    num_patches, embed_dim = 8, 32
    B = 2

    key = jax.random.PRNGKey(0)
    k_cls, k_x = jax.random.split(key)

    # Deterministic parameter init: trunc_normal_(std=0.02), clipped at +/- 2 std.
    cls_token = 0.02 * jax.random.truncated_normal(
        k_cls, -2.0, 2.0, (1, 1, embed_dim), dtype=jnp.float32)
    pos_embed = _make_sinusoidal_pos_embed(num_patches + 1, embed_dim, temperature=10000.0)

    x = jax.random.normal(k_x, (B, num_patches, embed_dim), dtype=jnp.float32)

    out = sinusoidal_positional_embedding(x, cls_token, pos_embed)
    out = jax.block_until_ready(out)

    # Reference check (plain JAX) to validate semantics.
    ref = jnp.concatenate(
        [jnp.broadcast_to(cls_token, (B, 1, embed_dim)), x], axis=1) + pos_embed
    assert out.shape == (B, num_patches + 1, embed_dim)
    assert jnp.allclose(out, ref, atol=1e-6), "mismatch vs reference"

    print("KERNEL_OK")
</pallas_src>

<mosaic_0001>
module attributes {stable_mosaic.version = 11 : i64} {
  func.func @_pos_embed_kernel(%arg0: i32, %arg1: memref<1x1x32xf32, #tpu.memory_space<vmem>>, %arg2: memref<1x8x32xf32, #tpu.memory_space<vmem>>, %arg3: memref<2x8x32xf32, #tpu.memory_space<vmem>>, %arg4: memref<2x9x32xf32, #tpu.memory_space<vmem>>) attributes {dimension_semantics = [#tpu.dimension_semantics<parallel>], iteration_bounds = array<i64: 1>, scalar_prefetch = 0 : i64, scratch_operands = 0 : i64, tpu.core_type = #tpu.core_type<tc>, window_params = [{pipeline_mode = #tpu.pipeline_mode<synchronous>, transform_indices = @transform_0, window_bounds = array<i64: 1, 1, 32>}, {pipeline_mode = #tpu.pipeline_mode<synchronous>, transform_indices = @transform_1, window_bounds = array<i64: 1, 8, 32>}, {transform_indices = @transform_2, window_bounds = array<i64: 2, 8, 32>}, {transform_indices = @transform_3, window_bounds = array<i64: 2, 9, 32>}]} {
    %c0 = arith.constant 0 : index
    %c0_0 = arith.constant 0 : index
    %c0_1 = arith.constant 0 : index
    %0 = vector.load %arg1[%c0, %c0_0, %c0_1] : memref<1x1x32xf32, #tpu.memory_space<vmem>>, vector<1x1x32xf32>
    %1 = vector.shape_cast %0 : vector<1x1x32xf32> to vector<1x1x32xf32>
    %2 = vector.broadcast %1 : vector<1x1x32xf32> to vector<2x1x32xf32>
    %c0_2 = arith.constant 0 : index
    %c0_3 = arith.constant 0 : index
    %c0_4 = arith.constant 0 : index
    %3 = vector.load %arg4[%c0_2, %c0_3, %c0_4] : memref<2x9x32xf32, #tpu.memory_space<vmem>>, vector<2x1x32xf32>
    tpu.vector_store %arg4[%c0_2, %c0_3, %c0_4], %2 {strides = array<i32>} : memref<2x9x32xf32, #tpu.memory_space<vmem>>, vector<2x1x32xf32>,
    %c0_5 = arith.constant 0 : index
    %c0_6 = arith.constant 0 : index
    %c0_7 = arith.constant 0 : index
    %4 = vector.load %arg3[%c0_5, %c0_6, %c0_7] : memref<2x8x32xf32, #tpu.memory_space<vmem>>, vector<2x8x32xf32>
    %c0_8 = arith.constant 0 : index
    %c0_9 = arith.constant 0 : index
    %c0_10 = arith.constant 0 : index
    %5 = vector.load %arg2[%c0_8, %c0_9, %c0_10] : memref<1x8x32xf32, #tpu.memory_space<vmem>>, vector<1x8x32xf32>
    %6 = vector.broadcast %5 : vector<1x8x32xf32> to vector<2x8x32xf32>
    %7 = arith.addf %4, %6 : vector<2x8x32xf32>
    %c0_11 = arith.constant 0 : index
    %c1 = arith.constant 1 : index
    %c0_12 = arith.constant 0 : index
    %8 = vector.load %arg4[%c0_11, %c1, %c0_12] : memref<2x9x32xf32, #tpu.memory_space<vmem>>, vector<2x8x32xf32>
    tpu.vector_store %arg4[%c0_11, %c1, %c0_12], %7 {strides = array<i32>} : memref<2x9x32xf32, #tpu.memory_space<vmem>>, vector<2x8x32xf32>,
    return
  }
  func.func @transform_0(%arg0: i32) -> (i32, i32, i32) {
    %c0_i32 = arith.constant 0 : i32
    %c0_i32_0 = arith.constant 0 : i32
    %c0_i32_1 = arith.constant 0 : i32
    %c0_i32_2 = arith.constant 0 : i32
    return %c0_i32, %c0_i32_0, %c0_i32_1 : i32, i32, i32
  }
  func.func @transform_1(%arg0: i32) -> (i32, i32, i32) {
    %c0_i32 = arith.constant 0 : i32
    %c0_i32_0 = arith.constant 0 : i32
    %c0_i32_1 = arith.constant 0 : i32
    %c0_i32_2 = arith.constant 0 : i32
    return %c0_i32, %c0_i32_0, %c0_i32_1 : i32, i32, i32
  }
  func.func @transform_2(%arg0: i32) -> (i32, i32, i32) {
    %c0_i32 = arith.constant 0 : i32
    %c0_i32_0 = arith.constant 0 : i32
    %c0_i32_1 = arith.constant 0 : i32
    return %arg0, %c0_i32, %c0_i32_0 : i32, i32, i32
  }
  func.func @transform_3(%arg0: i32) -> (i32, i32, i32) {
    %c0_i32 = arith.constant 0 : i32
    %c0_i32_0 = arith.constant 0 : i32
    %c0_i32_1 = arith.constant 0 : i32
    return %arg0, %c0_i32, %c0_i32_0 : i32, i32, i32
  }
}

</mosaic_0001>

<llo_original>
// kernel: tpu_custom_call.1
$region0: #{tpu_custom_call.1}
  #allocation0 [shape = 'u32[]', space=smem, size = 0x4, offset = 0x4, fixed_abs, tag = 'smem constant byte address 0x4 - core index']
  #allocation1 [shape = 'u32[72,128]{1,0:T(1,128)}', space=vmem, size = 0x9000, scoped, tag = 'internal scratch']
  %s0 = inlined_call_operand.hbm [shape: f32[1,1,32], index: 0, kind: input, shape index: {}]
  %s1 = inlined_call_operand.hbm [shape: f32[1,8,32], index: 1, kind: input, shape index: {}]
  %s2 = inlined_call_operand.hbm [shape: f32[2,8,32], index: 2, kind: input, shape index: {}]
  %s3 = inlined_call_operand.vmem [shape: f32[2,9,32], index: 3, kind: output, shape index: {}]
  %s4 = sld [smem:[#allocation0]]
  $region34: #{tpu_custom_call.1} parent=0
    _
  %s6 = ssub.s32 1, %s4
  %s7 = scalar_select 0, %s6, %s4
  $region1: #{tpu_custom_call.1} parent=0
    #allocation2 [shape = 'u8[512]{0}', space=vmem, size = 0x400, scoped, tag = 'input window, operand 0, single buffered']
    #allocation3 [shape = 's32[1]{0}', space=sflag, size = 0x4, scoped, tag = 'scoped memory for tpu_custom_call.1']
    #allocation4 [shape = 'u8[4096]{0}', space=vmem, size = 0x1000, scoped, tag = 'input window, operand 1, single buffered']
    #allocation5 [shape = 's32[1]{0}', space=sflag, size = 0x4, scoped, tag = 'scoped memory for tpu_custom_call.1']
    #allocation6 [shape = 'u8[8192]{0}', space=vmem, size = 0x2000, scoped, tag = 'input window, operand 2, single buffered']
    %8 = vsyncpa [#allocation3], 0
    %9 = vsyncpa [#allocation5], 0
    // Predicated region
    $region2: #{tpu_custom_call.1} parent=1 // pred_check
      _
    $region3: #{tpu_custom_call.1} parent=1 // pred_check_branch
      %11 = sbr.rel (0) target = $region5
    $region4: #{tpu_custom_call.1} parent=1 // pred_region
      %13 = vsyncadd [#allocation3], 0
      %s15 = sshll.u32 %s0, 4
      %s16 = int_to_ptr.hbm [resolvable:$true] %s15
      %s17 = sshll.u32 [#allocation2], 4
      %s18 = int_to_ptr.vmem [resolvable:$true] %s17
      %20 = dma.hbm_to_vmem [thread:$0]  %s16, 16, %s18, [#allocation3]
    $region5: #{tpu_custom_call.1} parent=1 // pred_fallthru
      _
    // Predicated region
    $region6: #{tpu_custom_call.1} parent=1 // pred_check
      _
    $region7: #{tpu_custom_call.1} parent=1 // pred_check_branch
      %22 = sbr.rel (0) target = $region9
    $region8: #{tpu_custom_call.1} parent=1 // pred_region
      %24 = vsyncadd [#allocation5], 0
      %s26 = sshll.u32 %s1, 4
      %s27 = int_to_ptr.hbm [resolvable:$true] %s26
      %s28 = sshll.u32 [#allocation4], 4
      %s29 = int_to_ptr.vmem [resolvable:$true] %s28
      %31 = dma.hbm_to_vmem [thread:$0]  %s27, 128, %s29, [#allocation5]
    $region9: #{tpu_custom_call.1} parent=1 // pred_fallthru
      _
    // Predicated region
    $region10: #{tpu_custom_call.1} parent=1 // pred_check
      _
    $region11: #{tpu_custom_call.1} parent=1 // pred_check_branch
      %33 = sbr.rel (0) target = $region13
    $region12: #{tpu_custom_call.1} parent=1 // pred_region
      %35 = vsyncadd [#allocation5], 0
      %s36 = sshll.u32 %s2, 4
      %s37 = int_to_ptr.hbm [resolvable:$true] %s36
      %s38 = sshll.u32 [#allocation6], 4
      %s39 = int_to_ptr.vmem [resolvable:$true] %s38
      %44 = dma.hbm_to_vmem [thread:$0]  %s37, 256, %s39, [#allocation5], 128, 128, 8
    $region13: #{tpu_custom_call.1} parent=1 // pred_fallthru
      _
    // Predicated region
    $region14: #{tpu_custom_call.1} parent=1 // pred_check
      _
    $region15: #{tpu_custom_call.1} parent=1 // pred_check_branch
      %46 = sbr.rel (0) target = $region17
    $region16: #{tpu_custom_call.1} parent=1 // pred_region
      %48 = dma.done [#allocation3], 16
    $region17: #{tpu_custom_call.1} parent=1 // pred_fallthru
      _
    // Predicated region
    $region18: #{tpu_custom_call.1} parent=1 // pred_check
      _
    $region19: #{tpu_custom_call.1} parent=1 // pred_check_branch
      %50 = sbr.rel (0) target = $region21
    $region20: #{tpu_custom_call.1} parent=1 // pred_region
      %52 = dma.done [#allocation5], 128
    $region21: #{tpu_custom_call.1} parent=1 // pred_fallthru
      _
    // Predicated region
    $region22: #{tpu_custom_call.1} parent=1 // pred_check
      _
    $region23: #{tpu_custom_call.1} parent=1 // pred_check_branch
      %54 = sbr.rel (0) target = $region25
    $region24: #{tpu_custom_call.1} parent=1 // pred_region
      %56 = dma.done [#allocation5], 256
    $region25: #{tpu_custom_call.1} parent=1 // pred_fallthru
      _
    %v57 = vld [vmem:[#allocation2] sm:$0x1]
    %vm58 = vcmask 253952
    %59 = vst.msk [vmem:[%s3] sm:$0x1] %vm58, %v57
    %60 = vst.msk [vmem:[%s3 + $0x10] sm:$0x1] %vm58, %v57
    %v61 = vld [vmem:[#allocation6] sm:$0xff]
    %v62 = vld [vmem:[#allocation6 + $0x8] sm:$0xff]
    %v63 = vld [vmem:[#allocation4] sm:$0xff]
    %v64 = vadd.f32 %v61, %v63
    %v65 = vadd.f32 %v62, %v63
    %vm66 = vcmask 261120
    %67 = vst.msk [vmem:[%s3 + $0x1] sm:$0xff] %vm66, %v64
    %68 = vst.msk [vmem:[%s3 + $0x11] sm:$0xff] %vm66, %v65
    // Predicated region
    $region26: #{tpu_custom_call.1} parent=1 // pred_check
      _
    $region27: #{tpu_custom_call.1} parent=1 // pred_check_branch
      %70 = sbr.rel (0) target = $region29
    $region28: #{tpu_custom_call.1} parent=1 // pred_region
      _
    $region29: #{tpu_custom_call.1} parent=1 // pred_fallthru
      _
    // Predicated region
    $region30: #{tpu_custom_call.1} parent=1 // pred_check
      _
    $region31: #{tpu_custom_call.1} parent=1 // pred_check_branch
      %72 = sbr.rel (0) target = $region33
    $region32: #{tpu_custom_call.1} parent=1 // pred_region
      _
    $region33: #{tpu_custom_call.1} parent=1 // pred_fallthru
      _
    %73 = vsyncpa [#allocation3], 1
    %74 = vsyncpa [#allocation5], 1

</llo_original>
